<compile_context>
chip_gen: v7x
topology: tpu7x:2x2x1
jax: 0.10.0
libtpu: 0.0.40
codegen_flags: <defaults>
</compile_context>

<pallas_src>
import functools

import jax
import jax.numpy as jnp
from jax.experimental import pallas as pl
from jax.experimental.pallas import tpu as pltpu

_LANES = 128


def _round_up(v, m):
    return ((v + m - 1) // m) * m


def _out_channel_att_kernel(x_ref, w1t_ref, w2t_ref, bias_ref, out_ref, acc_ref,
                            *, hw, tile_hw, mid_pad, c2_pad):
    s = pl.program_id(1)                              # hw tile index (last grid axis)

    @pl.when(s == 0)
    def _init():
        acc_ref[...] = jnp.full(acc_ref.shape, -jnp.inf, dtype=acc_ref.dtype)

    x = x_ref[...]                                    # (bn, c1, tile_hw)
    if hw % tile_hw != 0:
        # Ragged last tile: out-of-bounds lanes are undefined HBM data -> mask to -inf.
        col = jax.lax.broadcasted_iota(jnp.int32, x.shape, dimension=2)
        x = jnp.where(col + s * tile_hw < hw, x, -jnp.inf)

    # Running global-max pool: one VPU vmax per vreg, no per-tile lane reduce.
    acc_ref[...] = jnp.maximum(acc_ref[...], x)

    @pl.when(s == pl.num_programs(1) - 1)
    def _finalize():
        pooled = jnp.max(acc_ref[...], axis=2)        # single cross-lane reduce -> (bn, c1)
        bias = bias_ref[...]                          # (2, pad_w)

        # Conv2d(c1 -> mid, 1x1) + bias + ReLU  (mid lane-padded, zeros are exact)
        y1 = jnp.dot(pooled, w1t_ref[...], preferred_element_type=jnp.float32)
        y1 = jnp.maximum(y1 + bias[0:1, :mid_pad], 0.0)

        # Conv2d(mid -> c2, 1x1) + bias + sigmoid (c2 lane-padded -> lane-dense store)
        y2 = jnp.dot(y1, w2t_ref[...], preferred_element_type=jnp.float32)
        y2 = y2 + bias[1:2, :c2_pad]
        out_ref[...] = jax.nn.sigmoid(y2)


def prepare_out_channel_att_params(w1, b1, w2, b2):
    """One-time host-side prep (call at module init, NOT per forward):
    transpose + lane-pad both 1x1-conv weights, pack both biases into one array."""
    mid, c1 = w1.shape
    c2 = w2.shape[0]
    mid_pad = max(_LANES, _round_up(mid, _LANES))
    c2_pad = max(_LANES, _round_up(c2, _LANES))
    pad_w = max(mid_pad, c2_pad)

    w1t = jnp.zeros((c1, mid_pad), jnp.float32).at[:, :mid].set(
        jnp.asarray(w1, jnp.float32).T)                              # (c1, mid_pad)
    w2t = jnp.zeros((mid_pad, c2_pad), jnp.float32).at[:mid, :c2].set(
        jnp.asarray(w2, jnp.float32).T)                              # (mid_pad, c2_pad)
    bias = jnp.zeros((2, pad_w), jnp.float32)
    bias = bias.at[0, :mid].set(jnp.asarray(b1, jnp.float32))
    bias = bias.at[1, :c2].set(jnp.asarray(b2, jnp.float32))

    return dict(w1t=w1t, w2t=w2t, bias=bias,
                c1=c1, c2=c2, mid_pad=mid_pad, c2_pad=c2_pad)


def out_channel_att_forward(x, params):
    """x: (n, c1, h, w) float32; params from prepare_out_channel_att_params()."""
    n, c1, h, w = x.shape
    hw = h * w
    w1t, w2t, bias = params["w1t"], params["w2t"], params["bias"]
    mid_pad, c2_pad, c2 = params["mid_pad"], params["c2_pad"], params["c2"]
    pad_w = bias.shape[1]
    assert c1 == params["c1"]

    # Batch tile: multiple of 8 (output sublane rule) when possible, else full batch.
    bn = 8 if (n % 8 == 0 and n > 8) else n

    # hw tile: largest multiple of 128 keeping the double-buffered x tile + accumulator
    # comfortably inside VMEM on every chip generation (<= ~12 MiB per x-tile buffer).
    per_lane_bytes = bn * c1 * 4
    budget_lanes = max(_LANES, ((12 << 20) // per_lane_bytes) // _LANES * _LANES)
    cap_lanes = min(budget_lanes, 4096)
    tile_hw = hw if hw <= cap_lanes else cap_lanes

    grid = (pl.cdiv(n, bn), pl.cdiv(hw, tile_hw))

    vmem_needed = 3 * bn * c1 * tile_hw * 4 + 4 * (w1t.size + w2t.size + bias.size
                                                   + 2 * bn * c2_pad)
    vmem_limit = int(min(48 << 20, max(vmem_needed + (2 << 20), 16 << 20)))

    flops = n * c1 * hw + 2 * n * c1 * mid_pad + 2 * n * mid_pad * c2_pad
    bytes_accessed = 4 * (n * c1 * hw + w1t.size + w2t.size + bias.size + n * c2_pad)

    kernel = functools.partial(_out_channel_att_kernel, hw=hw, tile_hw=tile_hw,
                               mid_pad=mid_pad, c2_pad=c2_pad)

    out_padded = pl.pallas_call(
        kernel,
        grid=grid,
        in_specs=[
            pl.BlockSpec((bn, c1, tile_hw), lambda b, s: (b, 0, s)),   # streamed x tiles
            pl.BlockSpec((c1, mid_pad), lambda b, s: (0, 0)),          # resident weights
            pl.BlockSpec((mid_pad, c2_pad), lambda b, s: (0, 0)),
            pl.BlockSpec((2, pad_w), lambda b, s: (0, 0)),
        ],
        out_specs=pl.BlockSpec((bn, c2_pad), lambda b, s: (b, 0)),
        out_shape=jax.ShapeDtypeStruct((n, c2_pad), jnp.float32),
        scratch_shapes=[pltpu.VMEM((bn, c1, tile_hw), jnp.float32)],   # running-max acc
        compiler_params=pltpu.CompilerParams(
            dimension_semantics=("parallel", "arbitrary"),
            vmem_limit_bytes=vmem_limit),
        cost_estimate=pl.CostEstimate(flops=flops,
                                      transcendentals=n * c2_pad,
                                      bytes_accessed=bytes_accessed),
    )(x.reshape(n, c1, hw), w1t, w2t, bias)

    # Drop lane padding, restore NCHW (n, c2, 1, 1).
    return out_padded[:, :c2].reshape(n, c2, 1, 1)


# ----------------------------- pure-JAX reference ------------------------------
def reference_forward(x, w1, b1, w2, b2):
    pooled = jnp.max(x, axis=(2, 3))                              # AdaptiveMaxPool2d(1)
    y1 = jnp.maximum(pooled @ w1.T + b1[None, :], 0.0)            # conv1x1 + ReLU
    y2 = y1 @ w2.T + b2[None, :]                                  # conv1x1
    return jax.nn.sigmoid(y2)[:, :, None, None]                   # (n, c2, 1, 1)


if __name__ == "__main__":
    # Out_Channel_Att(c1=16, c2=8), se_ratio=0.25 -> mid=4.
    batch, c1, c2, H, W = 2, 16, 8, 16, 16
    se_ratio = 0.25
    mid = int(c1 * se_ratio)
    assert mid > 0

    key = jax.random.PRNGKey(0)
    kx, k1, kb1, k2, kb2 = jax.random.split(key, 5)
    x = jax.random.normal(kx, (batch, c1, H, W), jnp.float32)
    w1 = jax.random.normal(k1, (mid, c1), jnp.float32) * (1.0 / c1) ** 0.5
    b1 = jax.random.normal(kb1, (mid,), jnp.float32) * 0.1
    w2 = jax.random.normal(k2, (c2, mid), jnp.float32) * (1.0 / mid) ** 0.5
    b2 = jax.random.normal(kb2, (c2,), jnp.float32) * 0.1

    params = prepare_out_channel_att_params(w1, b1, w2, b2)   # hoisted one-time prep
    out = out_channel_att_forward(x, params)
    jax.block_until_ready(out)

    ref = reference_forward(x, w1, b1, w2, b2)
    assert out.shape == (batch, c2, 1, 1)
    assert jnp.allclose(out, ref, atol=1e-5), "Out_Channel_Att output mismatch"

    print("KERNEL_OK")
</pallas_src>

<mosaic_0001>
module attributes {stable_mosaic.version = 11 : i64} {
  func.func @_out_channel_att_kernel(%arg0: i32, %arg1: i32, %arg2: memref<2x16x256xf32, #tpu.memory_space<vmem>>, %arg3: memref<16x128xf32, #tpu.memory_space<vmem>>, %arg4: memref<128x128xf32, #tpu.memory_space<vmem>>, %arg5: memref<2x128xf32, #tpu.memory_space<vmem>>, %arg6: memref<2x128xf32, #tpu.memory_space<vmem>>, %arg7: memref<2x16x256xf32, #tpu.memory_space<vmem>>) attributes {dimension_semantics = [#tpu.dimension_semantics<parallel>, #tpu.dimension_semantics<arbitrary>], iteration_bounds = array<i64: 1, 1>, scalar_prefetch = 0 : i64, scratch_operands = 1 : i64, tpu.core_type = #tpu.core_type<tc>, window_params = [{transform_indices = @transform_0, window_bounds = array<i64: 2, 16, 256>}, {pipeline_mode = #tpu.pipeline_mode<synchronous>, transform_indices = @transform_1, window_bounds = array<i64: 16, 128>}, {pipeline_mode = #tpu.pipeline_mode<synchronous>, transform_indices = @transform_2, window_bounds = array<i64: 128, 128>}, {pipeline_mode = #tpu.pipeline_mode<synchronous>, transform_indices = @transform_3, window_bounds = array<i64: 2, 128>}, {transform_indices = @transform_4, window_bounds = array<i64: 2, 128>}]} {
    %c0_i32 = arith.constant 0 : i32
    %0 = arith.cmpi eq, %arg1, %c0_i32 : i32
    %1 = arith.extui %0 : i1 to i32
    %c0_i32_0 = arith.constant 0 : i32
    %2 = arith.cmpi ne, %1, %c0_i32_0 : i32
    scf.if %2 {
      %cst = arith.constant 0xFF800000 : f32
      %10 = vector.broadcast %cst : f32 to vector<2x16x256xf32>
      %c0_11 = arith.constant 0 : index
      %c0_12 = arith.constant 0 : index
      %c0_13 = arith.constant 0 : index
      %11 = vector.load %arg7[%c0_11, %c0_12, %c0_13] : memref<2x16x256xf32, #tpu.memory_space<vmem>>, vector<2x16x256xf32>
      tpu.vector_store %arg7[%c0_11, %c0_12, %c0_13], %10 {strides = array<i32>} : memref<2x16x256xf32, #tpu.memory_space<vmem>>, vector<2x16x256xf32>,
    } else {
    }
    %c0 = arith.constant 0 : index
    %c0_1 = arith.constant 0 : index
    %c0_2 = arith.constant 0 : index
    %3 = vector.load %arg2[%c0, %c0_1, %c0_2] : memref<2x16x256xf32, #tpu.memory_space<vmem>>, vector<2x16x256xf32>
    %c0_3 = arith.constant 0 : index
    %c0_4 = arith.constant 0 : index
    %c0_5 = arith.constant 0 : index
    %4 = vector.load %arg7[%c0_3, %c0_4, %c0_5] : memref<2x16x256xf32, #tpu.memory_space<vmem>>, vector<2x16x256xf32>
    %5 = arith.maximumf %4, %3 : vector<2x16x256xf32>
    %c0_6 = arith.constant 0 : index
    %c0_7 = arith.constant 0 : index
    %c0_8 = arith.constant 0 : index
    %6 = vector.load %arg7[%c0_6, %c0_7, %c0_8] : memref<2x16x256xf32, #tpu.memory_space<vmem>>, vector<2x16x256xf32>
    tpu.vector_store %arg7[%c0_6, %c0_7, %c0_8], %5 {strides = array<i32>} : memref<2x16x256xf32, #tpu.memory_space<vmem>>, vector<2x16x256xf32>,
    %c0_i32_9 = arith.constant 0 : i32
    %7 = arith.cmpi eq, %arg1, %c0_i32_9 : i32
    %8 = arith.extui %7 : i1 to i32
    %c0_i32_10 = arith.constant 0 : i32
    %9 = arith.cmpi ne, %8, %c0_i32_10 : i32
    scf.if %9 {
      %c0_11 = arith.constant 0 : index
      %c0_12 = arith.constant 0 : index
      %c0_13 = arith.constant 0 : index
      %10 = vector.load %arg7[%c0_11, %c0_12, %c0_13] : memref<2x16x256xf32, #tpu.memory_space<vmem>>, vector<2x16x256xf32>
      %cst = arith.constant dense<0xFF800000> : vector<2x16xf32>
      %11 = vector.multi_reduction <maximumf>, %10, %cst [2] : vector<2x16x256xf32> to vector<2x16xf32>
      %c0_14 = arith.constant 0 : index
      %c0_15 = arith.constant 0 : index
      %12 = vector.load %arg5[%c0_14, %c0_15] : memref<2x128xf32, #tpu.memory_space<vmem>>, vector<2x128xf32>
      %c0_16 = arith.constant 0 : index
      %c0_17 = arith.constant 0 : index
      %13 = vector.load %arg3[%c0_16, %c0_17] : memref<16x128xf32, #tpu.memory_space<vmem>>, vector<16x128xf32>
      %cst_18 = arith.constant dense<0.000000e+00> : vector<2x128xf32>
      %14 = tpu.matmul %11, %13, %cst_18 {dimension_numbers = #tpu.dot_dimension_numbers<[1], [0], [0], [1], [0, 0, 1, 1], [], []>} : vector<2x16xf32>, vector<16x128xf32>, vector<2x128xf32> -> vector<2x128xf32>
      %15 = vector.extract_strided_slice %12 {offsets = [0, 0], sizes = [1, 128], strides = [1, 1]} : vector<2x128xf32> to vector<1x128xf32>
      %16 = vector.broadcast %15 : vector<1x128xf32> to vector<2x128xf32>
      %17 = arith.addf %14, %16 : vector<2x128xf32>
      %cst_19 = arith.constant 0.000000e+00 : f32
      %18 = vector.broadcast %cst_19 : f32 to vector<2x128xf32>
      %19 = arith.maximumf %17, %18 : vector<2x128xf32>
      %c0_20 = arith.constant 0 : index
      %c0_21 = arith.constant 0 : index
      %20 = vector.load %arg4[%c0_20, %c0_21] : memref<128x128xf32, #tpu.memory_space<vmem>>, vector<128x128xf32>
      %cst_22 = arith.constant dense<0.000000e+00> : vector<2x128xf32>
      %21 = tpu.matmul %19, %20, %cst_22 {dimension_numbers = #tpu.dot_dimension_numbers<[1], [0], [0], [1], [0, 0, 1, 1], [], []>} : vector<2x128xf32>, vector<128x128xf32>, vector<2x128xf32> -> vector<2x128xf32>
      %22 = vector.extract_strided_slice %12 {offsets = [1, 0], sizes = [1, 128], strides = [1, 1]} : vector<2x128xf32> to vector<1x128xf32>
      %23 = vector.broadcast %22 : vector<1x128xf32> to vector<2x128xf32>
      %24 = arith.addf %21, %23 : vector<2x128xf32>
      %25 = arith.negf %24 : vector<2x128xf32>
      %26 = math.exp %25 : vector<2x128xf32>
      %cst_23 = arith.constant 1.000000e+00 : f32
      %27 = vector.broadcast %cst_23 : f32 to vector<2x128xf32>
      %28 = arith.addf %27, %26 : vector<2x128xf32>
      %29 = arith.divf %27, %28 : vector<2x128xf32>
      %c0_24 = arith.constant 0 : index
      %c0_25 = arith.constant 0 : index
      %30 = vector.load %arg6[%c0_24, %c0_25] : memref<2x128xf32, #tpu.memory_space<vmem>>, vector<2x128xf32>
      tpu.vector_store %arg6[%c0_24, %c0_25], %29 {strides = array<i32>} : memref<2x128xf32, #tpu.memory_space<vmem>>, vector<2x128xf32>,
    } else {
    }
    return
  }
  func.func @transform_0(%arg0: i32, %arg1: i32) -> (i32, i32, i32) {
    %c0_i32 = arith.constant 0 : i32
    %c0_i32_0 = arith.constant 0 : i32
    return %arg0, %c0_i32, %arg1 : i32, i32, i32
  }
  func.func @transform_1(%arg0: i32, %arg1: i32) -> (i32, i32) {
    %c0_i32 = arith.constant 0 : i32
    %c0_i32_0 = arith.constant 0 : i32
    %c0_i32_1 = arith.constant 0 : i32
    return %c0_i32, %c0_i32_0 : i32, i32
  }
  func.func @transform_2(%arg0: i32, %arg1: i32) -> (i32, i32) {
    %c0_i32 = arith.constant 0 : i32
    %c0_i32_0 = arith.constant 0 : i32
    %c0_i32_1 = arith.constant 0 : i32
    return %c0_i32, %c0_i32_0 : i32, i32
  }
  func.func @transform_3(%arg0: i32, %arg1: i32) -> (i32, i32) {
    %c0_i32 = arith.constant 0 : i32
    %c0_i32_0 = arith.constant 0 : i32
    %c0_i32_1 = arith.constant 0 : i32
    return %c0_i32, %c0_i32_0 : i32, i32
  }
  func.func @transform_4(%arg0: i32, %arg1: i32) -> (i32, i32) {
    %c0_i32 = arith.constant 0 : i32
    %c0_i32_0 = arith.constant 0 : i32
    return %arg0, %c0_i32 : i32, i32
  }
}

</mosaic_0001>

<llo_original>
// kernel: tpu_custom_call.1
$region0: #{tpu_custom_call.1}
  #allocation0 [shape = 'u32[]', space=smem, size = 0x4, offset = 0x4, fixed_abs, tag = 'smem constant byte address 0x4 - core index']
  #allocation1 [shape = 'u32[144,128]{1,0:T(1,128)}', space=vmem, size = 0x12000, scoped, tag = 'internal scratch']
  #allocation2 [shape = 'f32[2,16,256]{2,1,0:T(8,128)}', space=vmem, size = 0x8000, scoped, tag = 'scratch operand']
  %s0 = inlined_call_operand.hbm [shape: f32[2,16,256], index: 0, kind: input, shape index: {}]
  %s1 = inlined_call_operand.hbm [shape: f32[16,128], index: 1, kind: input, shape index: {}]
  %s2 = inlined_call_operand.hbm [shape: f32[128,128], index: 2, kind: input, shape index: {}]
  %s3 = inlined_call_operand.vmem [shape: f32[2,128], index: 3, kind: input, shape index: {}]
  %s4 = inlined_call_operand.hbm [shape: f32[2,128], index: 4, kind: output, shape index: {}]
  %s5 = sld [smem:[#allocation0]]
  $region46: #{tpu_custom_call.1} parent=0
    _
  %s7 = ssub.s32 1, %s5
  %s8 = scalar_select 0, %s7, %s5
  $region1: #{tpu_custom_call.1} parent=0
    #allocation3 [shape = 'u8[32768]{0}', space=vmem, size = 0x8000, scoped, tag = 'input window, operand 0, single buffered']
    #allocation4 [shape = 's32[1]{0}', space=sflag, size = 0x4, scoped, tag = 'scoped memory for tpu_custom_call.1']
    #allocation5 [shape = 's32[1]{0}', space=sflag, size = 0x4, scoped, tag = 'scoped memory for tpu_custom_call.1']
    #allocation6 [shape = 'u8[8192]{0}', space=vmem, size = 0x2000, scoped, tag = 'input window, operand 1, single buffered']
    #allocation7 [shape = 's32[1]{0}', space=sflag, size = 0x4, scoped, tag = 'scoped memory for tpu_custom_call.1']
    #allocation8 [shape = 'u8[65536]{0}', space=vmem, size = 0x10000, scoped, tag = 'input window, operand 2, single buffered']
    #allocation9 [shape = 'u8[1024]{0}', space=vmem, size = 0x400, scoped, tag = 'output window, operand 0, single buffered']
    %9 = vsyncpa [#allocation4], 0
    %10 = vsyncpa [#allocation7], 0
    %11 = vsyncpa [#allocation5], 0
    // Predicated region
    $region2: #{tpu_custom_call.1} parent=1 // pred_check
      _
    $region3: #{tpu_custom_call.1} parent=1 // pred_check_branch
      %13 = sbr.rel (0) target = $region5
    $region4: #{tpu_custom_call.1} parent=1 // pred_region
      %s15 = ssub.s32 1024, 1024
      %16 = vsyncadd [#allocation4], %s15
      %s17 = sshll.u32 [#allocation3], 4
      %s18 = int_to_ptr.vmem [resolvable:$true] %s17
      %23 = dma.hbm_to_vmem [thread:$0]  %s0, 1024, %s18, [#allocation4], 256, 256, 16
    $region5: #{tpu_custom_call.1} parent=1 // pred_fallthru
      _
    // Predicated region
    $region6: #{tpu_custom_call.1} parent=1 // pred_check
      _
    $region7: #{tpu_custom_call.1} parent=1 // pred_check_branch
      %25 = sbr.rel (0) target = $region9
    $region8: #{tpu_custom_call.1} parent=1 // pred_region
      %s27 = ssub.s32 256, 256
      %28 = vsyncadd [#allocation7], %s27
      %s29 = sshll.u32 [#allocation6], 4
      %s30 = int_to_ptr.vmem [resolvable:$true] %s29
      %35 = dma.hbm_to_vmem [thread:$0]  %s1, 256, %s30, [#allocation7], 128, 128, 8
    $region9: #{tpu_custom_call.1} parent=1 // pred_fallthru
      _
    // Predicated region
    $region10: #{tpu_custom_call.1} parent=1 // pred_check
      _
    $region11: #{tpu_custom_call.1} parent=1 // pred_check_branch
      %37 = sbr.rel (0) target = $region13
    $region12: #{tpu_custom_call.1} parent=1 // pred_region
      %s39 = ssub.s32 2048, 2048
      %40 = vsyncadd [#allocation7], %s39
      %s41 = sshll.u32 [#allocation8], 4
      %s42 = int_to_ptr.vmem [resolvable:$true] %s41
      %47 = dma.hbm_to_vmem [thread:$0]  %s2, 2048, %s42, [#allocation7], 128, 128, 8
    $region13: #{tpu_custom_call.1} parent=1 // pred_fallthru
      _
    // Predicated region
    $region14: #{tpu_custom_call.1} parent=1 // pred_check
      _
    $region15: #{tpu_custom_call.1} parent=1 // pred_check_branch
      %49 = sbr.rel (0) target = $region17
    $region16: #{tpu_custom_call.1} parent=1 // pred_region
      _
    $region17: #{tpu_custom_call.1} parent=1 // pred_fallthru
      _
    // Predicated region
    $region18: #{tpu_custom_call.1} parent=1 // pred_check
      _
    $region19: #{tpu_custom_call.1} parent=1 // pred_check_branch
      %51 = sbr.rel (0) target = $region21
    $region20: #{tpu_custom_call.1} parent=1 // pred_region
      %52 = dma.done [#allocation4], 1024
    $region21: #{tpu_custom_call.1} parent=1 // pred_fallthru
      _
    // Predicated region
    $region22: #{tpu_custom_call.1} parent=1 // pred_check
      _
    $region23: #{tpu_custom_call.1} parent=1 // pred_check_branch
      %54 = sbr.rel (0) target = $region25
    $region24: #{tpu_custom_call.1} parent=1 // pred_region
      %55 = dma.done [#allocation7], 256
    $region25: #{tpu_custom_call.1} parent=1 // pred_fallthru
      _
    // Predicated region
    $region26: #{tpu_custom_call.1} parent=1 // pred_check
      _
    $region27: #{tpu_custom_call.1} parent=1 // pred_check_branch
      %57 = sbr.rel (0) target = $region29
    $region28: #{tpu_custom_call.1} parent=1 // pred_region
      %58 = dma.done [#allocation7], 2048
    $region29: #{tpu_custom_call.1} parent=1 // pred_fallthru
      _
    %p59 = scmp.eq.s32.totalorder 0, 0
    // Predicated region
    $region30: #{tpu_custom_call.1} parent=1 // pred_check
      %p60 = pneg %p59
    $region31: #{tpu_custom_call.1} parent=1 // pred_check_branch
      %62 = sbr.rel (%p60) target = $region33
    $region32: #{tpu_custom_call.1} parent=1 // pred_region
      %63 = vst [vmem:[#allocation2] sm:$0xff] -inf
      %64 = vst [vmem:[#allocation2 + $0x8] sm:$0xff] -inf
      %65 = vst [vmem:[#allocation2 + $0x10] sm:$0xff] -inf
      %66 = vst [vmem:[#allocation2 + $0x18] sm:$0xff] -inf
      %67 = vst [vmem:[#allocation2 + $0x20] sm:$0xff] -inf
      %68 = vst [vmem:[#allocation2 + $0x28] sm:$0xff] -inf
      %69 = vst [vmem:[#allocation2 + $0x30] sm:$0xff] -inf
      %70 = vst [vmem:[#allocation2 + $0x38] sm:$0xff] -inf
    $region33: #{tpu_custom_call.1} parent=1 // pred_fallthru
      _
    %v71 = vld [vmem:[#allocation3] sm:$0xff]
    %v72 = vld [vmem:[#allocation3 + $0x8] sm:$0xff]
    %v73 = vld [vmem:[#allocation3 + $0x10] sm:$0xff]
    %v74 = vld [vmem:[#allocation3 + $0x18] sm:$0xff]
    %v75 = vld [vmem:[#allocation3 + $0x20] sm:$0xff]
    %v76 = vld [vmem:[#allocation3 + $0x28] sm:$0xff]
    %v77 = vld [vmem:[#allocation3 + $0x30] sm:$0xff]
    %v78 = vld [vmem:[#allocation3 + $0x38] sm:$0xff]
    %v79 = vld [vmem:[#allocation2] sm:$0xff]
    %v80 = vld [vmem:[#allocation2 + $0x8] sm:$0xff]
    %v81 = vld [vmem:[#allocation2 + $0x10] sm:$0xff]
    %v82 = vld [vmem:[#allocation2 + $0x18] sm:$0xff]
    %v83 = vld [vmem:[#allocation2 + $0x20] sm:$0xff]
    %v84 = vld [vmem:[#allocation2 + $0x28] sm:$0xff]
    %v85 = vld [vmem:[#allocation2 + $0x30] sm:$0xff]
    %v86 = vld [vmem:[#allocation2 + $0x38] sm:$0xff]
    %v87 = vmax.f32 %v79, %v71
    %v88 = vmax.f32 %v80, %v72
    %v89 = vmax.f32 %v81, %v73
    %v90 = vmax.f32 %v82, %v74
    %v91 = vmax.f32 %v83, %v75
    %v92 = vmax.f32 %v84, %v76
    %v93 = vmax.f32 %v85, %v77
    %v94 = vmax.f32 %v86, %v78
    %95 = vst [vmem:[#allocation2] sm:$0xff] %v87
    %96 = vst [vmem:[#allocation2 + $0x8] sm:$0xff] %v88
    %97 = vst [vmem:[#allocation2 + $0x10] sm:$0xff] %v89
    %98 = vst [vmem:[#allocation2 + $0x18] sm:$0xff] %v90
    %99 = vst [vmem:[#allocation2 + $0x20] sm:$0xff] %v91
    %100 = vst [vmem:[#allocation2 + $0x28] sm:$0xff] %v92
    %101 = vst [vmem:[#allocation2 + $0x30] sm:$0xff] %v93
    %102 = vst [vmem:[#allocation2 + $0x38] sm:$0xff] %v94
    // Predicated region
    $region34: #{tpu_custom_call.1} parent=1 // pred_check
      %p103 = pneg %p59
    $region35: #{tpu_custom_call.1} parent=1 // pred_check_branch
      %105 = sbr.rel (%p103) target = $region37
    $region36: #{tpu_custom_call.1} parent=1 // pred_region
      %v106 = vld [vmem:[#allocation2] sm:$0xff]
      %v107 = vld [vmem:[#allocation2 + $0x8] sm:$0xff]
      %v108 = vld [vmem:[#allocation2 + $0x10] sm:$0xff]
      %v109 = vld [vmem:[#allocation2 + $0x18] sm:$0xff]
      %v110 = vld [vmem:[#allocation2 + $0x20] sm:$0xff]
      %v111 = vld [vmem:[#allocation2 + $0x28] sm:$0xff]
      %v112 = vld [vmem:[#allocation2 + $0x30] sm:$0xff]
      %v113 = vld [vmem:[#allocation2 + $0x38] sm:$0xff]
      %v114 = vmax.f32 %v106, %v107
      %115 = vmax.xlane.f32.xlu0 %v114
      %v116 = vpop.xlane.xlu0 %115
      %v117 = vmax.f32 %v108, %v109
      %118 = vmax.xlane.f32.xlu0 %v117
      %v119 = vpop.xlane.xlu0 %118
      %v120 = vmax.f32 %v110, %v111
      %121 = vmax.xlane.f32.xlu0 %v120
      %v122 = vpop.xlane.xlu0 %121
      %v123 = vmax.f32 %v112, %v113
      %124 = vmax.xlane.f32.xlu0 %v123
      %v125 = vpop.xlane.xlu0 %124
      %v126 = vld [vmem:[%s3] sm:$0x3]
      %v127 = vld [vmem:[#allocation6] sm:$0xff]
      %v128 = vld [vmem:[#allocation6 + $0x8] sm:$0xff]
      %v129 = vlaneseq
      %v130 = vshrl.u32 %v129, 7
      %v131 = vsub.s32 0, %v130
      %v132 = vrot.slane %v126, %v131
      %v137 = vlaneseq
      %v138 = vand.u32 %v137, 127
      %v139 = vlaneseq
      %v140 = vshrl.u32 %v139, 7
      %v141 = vsub.s32 %v138, %v140
      %v142 = vrot.slane %v116, %v141
      %v143 = vadd.s32 %v138, 4294967288
      %v144 = vlaneseq
      %v145 = vshrl.u32 %v144, 7
      %v146 = vsub.s32 %v143, %v145
      %v147 = vrot.slane %v119, %v146
      %vm148 = vcmask 130112
      %v149 = vsel %vm148, %v147, %v142
      %v150 = vlaneseq
      %v151 = vshrl.u32 %v150, 7
      %v152 = vsub.s32 %v138, %v151
      %v153 = vrot.slane %v122, %v152
      %v154 = vlaneseq
      %v155 = vshrl.u32 %v154, 7
      %v156 = vsub.s32 %v143, %v155
      %v157 = vrot.slane %v125, %v156
      %v158 = vsel %vm148, %v157, %v153
      %vm159 = vcmask 1041409
      %v160 = vsel %vm159, %v158, %v149
      %vm161 = vcmask 130048
      %v162 = vsel %vm161, %v160, 0
      %164 = vmatprep.subr.mxu0 0.0
      %165 = vmatpush1.msra.mxu0 %v127
      %166 = vmatprep.subr.mxu0 0.0
      %167 = vmatpush1.msra.mxu0 %v128
      %168 = vmatprep.subr.mxu0 0.0
      %169 = vmatpush1.msra.mxu0 0.0
      %170 = vmatprep.subr.mxu0 0.0
      %171 = vmatpush1.msra.mxu0 0.0
      %172 = vmatprep.subr.mxu0 0.0
      %173 = vmatpush1.msra.mxu0 0.0
      %174 = vmatprep.subr.mxu0 0.0
      %175 = vmatpush1.msra.mxu0 0.0
      %176 = vmatprep.subr.mxu0 0.0
      %177 = vmatpush1.msra.mxu0 0.0
      %178 = vmatprep.subr.mxu0 0.0
      %179 = vmatpush1.msra.mxu0 0.0
      %180 = vmatprep.subr.mxu0 0.0
      %181 = vmatpush1.msra.mxu0 0.0
      %182 = vmatprep.subr.mxu0 0.0
      %183 = vmatpush1.msra.mxu0 0.0
      %184 = vmatprep.subr.mxu0 0.0
      %185 = vmatpush1.msra.mxu0 0.0
      %186 = vmatprep.subr.mxu0 0.0
      %187 = vmatpush1.msra.mxu0 0.0
      %188 = vmatprep.subr.mxu0 0.0
      %189 = vmatpush1.msra.mxu0 0.0
      %190 = vmatprep.subr.mxu0 0.0
      %191 = vmatpush1.msra.mxu0 0.0
      %192 = vmatprep.subr.mxu0 0.0
      %193 = vmatpush1.msra.mxu0 0.0
      %194 = vmatprep.subr.mxu0 0.0
      %195 = vmatpush1.msra.mxu0 0.0
      %196 = vmatprep.subr.mxu0 0.0
      %197 = vmatpush1.msra.mxu0 0.0
      %198 = vmatprep.subr.mxu0 0.0
      %199 = vmatpush1.msra.mxu0 0.0
      %200 = vmatprep.subr.mxu0 0.0
      %201 = vmatpush1.msra.mxu0 0.0
      %202 = vmatprep.subr.mxu0 0.0
      %203 = vmatpush1.msra.mxu0 0.0
      %204 = vmatprep.subr.mxu0 0.0
      %205 = vmatpush1.msra.mxu0 0.0
      %206 = vmatprep.subr.mxu0 0.0
      %207 = vmatpush1.msra.mxu0 0.0
      %208 = vmatprep.subr.mxu0 0.0
      %209 = vmatpush1.msra.mxu0 0.0
      %210 = vmatprep.subr.mxu0 0.0
      %211 = vmatpush1.msra.mxu0 0.0
      %212 = vmatprep.subr.mxu0 0.0
      %213 = vmatpush1.msra.mxu0 0.0
      %214 = vmatprep.subr.mxu0 0.0
      %215 = vmatpush1.msra.mxu0 0.0
      %216 = vmatprep.subr.mxu0 0.0
      %217 = vmatpush1.msra.mxu0 0.0
      %218 = vmatprep.subr.mxu0 0.0
      %219 = vmatpush1.msra.mxu0 0.0
      %220 = vmatprep.subr.mxu0 0.0
      %221 = vmatpush1.msra.mxu0 0.0
      %222 = vmatprep.subr.mxu0 0.0
      %223 = vmatpush1.msra.mxu0 0.0
      %224 = vmatprep.subr.mxu0 0.0
      %225 = vmatpush1.msra.mxu0 0.0
      %226 = vmatprep.subr.mxu0 0.0
      %227 = vmatpush1.msra.mxu0 0.0
      %228 = vmatprep.mubr.f32.mxu0 0.0
      %229 = vmatmul.mubr.f32.gmra.mrb[0].mxu0 %v162
      %v230 = vpop.f32.mrb[0].mxu0
      %v231 = vadd.f32 %v132, %v230
      %v232 = vpop.f32.mrb[0].mxu0
      %233 = vdwg.mxu0
      %v234 = vmax.f32 %v231, 0.0
      %v235 = vld [vmem:[#allocation8] sm:$0xff]
      %v236 = vld [vmem:[#allocation8 + $0x8] sm:$0xff]
      %v237 = vld [vmem:[#allocation8 + $0x10] sm:$0xff]
      %v238 = vld [vmem:[#allocation8 + $0x18] sm:$0xff]
      %v239 = vld [vmem:[#allocation8 + $0x20] sm:$0xff]
      %v240 = vld [vmem:[#allocation8 + $0x28] sm:$0xff]
      %v241 = vld [vmem:[#allocation8 + $0x30] sm:$0xff]
      %v242 = vld [vmem:[#allocation8 + $0x38] sm:$0xff]
      %v243 = vld [vmem:[#allocation8 + $0x40] sm:$0xff]
      %v244 = vld [vmem:[#allocation8 + $0x48] sm:$0xff]
      %v245 = vld [vmem:[#allocation8 + $0x50] sm:$0xff]
      %v246 = vld [vmem:[#allocation8 + $0x58] sm:$0xff]
      %v247 = vld [vmem:[#allocation8 + $0x60] sm:$0xff]
      %v248 = vld [vmem:[#allocation8 + $0x68] sm:$0xff]
      %v249 = vld [vmem:[#allocation8 + $0x70] sm:$0xff]
      %v250 = vld [vmem:[#allocation8 + $0x78] sm:$0xff]
      %v251 = vlaneseq
      %v252 = vshrl.u32 %v251, 7
      %v253 = vsub.s32 1, %v252
      %v254 = vrot.slane %v126, %v253
      %255 = vmatprep.subr.mxu0 0.0
      %256 = vmatpush1.msra.mxu0 %v235
      %257 = vmatprep.subr.mxu0 0.0
      %258 = vmatpush1.msra.mxu0 %v236
      %259 = vmatprep.subr.mxu0 0.0
      %260 = vmatpush1.msra.mxu0 %v237
      %261 = vmatprep.subr.mxu0 0.0
      %262 = vmatpush1.msra.mxu0 %v238
      %263 = vmatprep.subr.mxu0 0.0
      %264 = vmatpush1.msra.mxu0 %v239
      %265 = vmatprep.subr.mxu0 0.0
      %266 = vmatpush1.msra.mxu0 %v240
      %267 = vmatprep.subr.mxu0 0.0
      %268 = vmatpush1.msra.mxu0 %v241
      %269 = vmatprep.subr.mxu0 0.0
      %270 = vmatpush1.msra.mxu0 %v242
      %271 = vmatprep.subr.mxu0 0.0
      %272 = vmatpush1.msra.mxu0 %v243
      %273 = vmatprep.subr.mxu0 0.0
      %274 = vmatpush1.msra.mxu0 %v244
      %275 = vmatprep.subr.mxu0 0.0
      %276 = vmatpush1.msra.mxu0 %v245
      %277 = vmatprep.subr.mxu0 0.0
      %278 = vmatpush1.msra.mxu0 %v246
      %279 = vmatprep.subr.mxu0 0.0
      %280 = vmatpush1.msra.mxu0 %v247
      %281 = vmatprep.subr.mxu0 0.0
      %282 = vmatpush1.msra.mxu0 %v248
      %283 = vmatprep.subr.mxu0 0.0
      %284 = vmatpush1.msra.mxu0 %v249
      %285 = vmatprep.subr.mxu0 0.0
      %286 = vmatpush1.msra.mxu0 %v250
      %287 = vmatprep.subr.mxu0 0.0
      %288 = vmatpush1.msra.mxu0 0.0
      %289 = vmatprep.subr.mxu0 0.0
      %290 = vmatpush1.msra.mxu0 0.0
      %291 = vmatprep.subr.mxu0 0.0
      %292 = vmatpush1.msra.mxu0 0.0
      %293 = vmatprep.subr.mxu0 0.0
      %294 = vmatpush1.msra.mxu0 0.0
      %295 = vmatprep.subr.mxu0 0.0
      %296 = vmatpush1.msra.mxu0 0.0
      %297 = vmatprep.subr.mxu0 0.0
      %298 = vmatpush1.msra.mxu0 0.0
      %299 = vmatprep.subr.mxu0 0.0
      %300 = vmatpush1.msra.mxu0 0.0
      %301 = vmatprep.subr.mxu0 0.0
      %302 = vmatpush1.msra.mxu0 0.0
      %303 = vmatprep.subr.mxu0 0.0
      %304 = vmatpush1.msra.mxu0 0.0
      %305 = vmatprep.subr.mxu0 0.0
      %306 = vmatpush1.msra.mxu0 0.0
      %307 = vmatprep.subr.mxu0 0.0
      %308 = vmatpush1.msra.mxu0 0.0
      %309 = vmatprep.subr.mxu0 0.0
      %310 = vmatpush1.msra.mxu0 0.0
      %311 = vmatprep.subr.mxu0 0.0
      %312 = vmatpush1.msra.mxu0 0.0
      %313 = vmatprep.subr.mxu0 0.0
      %314 = vmatpush1.msra.mxu0 0.0
      %315 = vmatprep.subr.mxu0 0.0
      %316 = vmatpush1.msra.mxu0 0.0
      %317 = vmatprep.subr.mxu0 0.0
      %318 = vmatpush1.msra.mxu0 0.0
      %319 = vmatprep.mubr.f32.mxu0 0.0
      %320 = vmatmul.mubr.f32.gmra.mrb[0].mxu0 %v234
      %v321 = vpop.f32.mrb[0].mxu0
      %v322 = vadd.f32 %v254, %v321
      %v323 = vpop.f32.mrb[0].mxu0
      %324 = vdwg.mxu0
      %v325 = vxor.u32 %v322, 2147483648
      %v326 = vmul.f32 %v325, 1.442695
      %v327 = vpow.pop %v326
      %v328 = vadd.f32 %v327, 1.0
      %v329 = vrcp.pop %v328
      %v330 = vmul.f32 1.0, %v329
      %331 = vst [vmem:[#allocation9] sm:$0x3] %v330
    $region37: #{tpu_custom_call.1} parent=1 // pred_fallthru
      _
    // Predicated region
    $region38: #{tpu_custom_call.1} parent=1 // pred_check
      _
    $region39: #{tpu_custom_call.1} parent=1 // pred_check_branch
      %333 = sbr.rel (0) target = $region41
    $region40: #{tpu_custom_call.1} parent=1 // pred_region
      %s335 = ssub.s32 32, 32
      %336 = vsyncadd [#allocation5], %s335
      %s338 = sshll.u32 [#allocation9], 4
      %s339 = int_to_ptr.vmem [resolvable:$true] %s338
      %341 = dma.vmem_to_hbm [thread:$0]  %s339, 32, %s4, [#allocation5]
    $region41: #{tpu_custom_call.1} parent=1 // pred_fallthru
      _
    // Predicated region
    $region42: #{tpu_custom_call.1} parent=1 // pred_check
      _
    $region43: #{tpu_custom_call.1} parent=1 // pred_check_branch
      %343 = sbr.rel (0) target = $region45
    $region44: #{tpu_custom_call.1} parent=1 // pred_region
      %344 = dma.done [#allocation5], 32
    $region45: #{tpu_custom_call.1} parent=1 // pred_fallthru
      _
    %345 = vsyncpa [#allocation4], 1
    %346 = vsyncpa [#allocation7], 1
    %347 = vsyncpa [#allocation5], 1

</llo_original>
